<compile_context>
chip_gen: v5e
topology: v5e:2x2
jax: 0.10.0
libtpu: 0.0.40
codegen_flags: <defaults>
</compile_context>

<pallas_src>
import jax
import jax.numpy as jnp
from jax.experimental import pallas as pl
from jax.experimental.pallas import tpu as pltpu

_LANE = 128
_SUBLANE = 8


def _round_up(n: int, m: int) -> int:
    return ((n + m - 1) // m) * m


def _round_down(n: int, m: int) -> int:
    return (n // m) * m


def _vmem_capacity_bytes(default: int = 64 << 20) -> int:
    """Per-core VMEM capacity; conservative (v7x-sized) fallback if query fails."""
    try:
        cap = getattr(pltpu.get_tpu_info(), "vmem_capacity_bytes", None)
        if cap:
            return int(cap)
    except Exception:
        pass
    return default


def _make_kernel(D: int, tk: int, k_ragged: bool):
    def kernel(x_ref, w_ref, b_ref, o_ref):
        # x_ref: (tb, tk) VMEM   w_ref: (1, tk) VMEM
        # b_ref: (1,)     SMEM   o_ref: (1, 1, tb) VMEM (lane-dense, resident over k)
        k = pl.program_id(1)

        prod = x_ref[...] * w_ref[...]                      # (tb, tk), VPU
        if k_ragged:
            # Ragged last feature block: zero the out-of-range lanes of the
            # product so garbage (possibly NaN/Inf) never reaches valid rows.
            lane = jax.lax.broadcasted_iota(jnp.int32, (1, tk), 1) + k * tk
            prod = jnp.where(lane < D, prod, 0.0)

        tb = prod.shape[0]
        # XLU lane reduction; reshape presents the per-row sums lane-dense.
        row = jnp.sum(prod, axis=-1).reshape(1, 1, tb)      # (1, 1, tb)

        @pl.when(k == 0)
        def _init():
            o_ref[...] = jnp.full(o_ref.shape, b_ref[0], dtype=o_ref.dtype)

        o_ref[...] += row

    return kernel


def linear_regressor(x, weight, bias):
    """Forward of torch.nn.Linear(in_dim, 1) + .flatten().

    x: (B, D) f32, weight: (1, D) f32, bias: (1,) f32  ->  (B,) f32
    """
    B, D = x.shape
    assert weight.shape == (1, D)
    bias = bias.reshape(1).astype(jnp.float32)

    vmem_cap = _vmem_capacity_bytes()
    # Per-buffer budget for one x tile (the pipeline double-buffers it).
    x_budget = max(1 << 20, min(12 << 20, vmem_cap // 6))

    # Feature (lane) tile: keep all of D resident unless even a 64-row tile
    # would blow the budget; then split D into 128-lane-multiple chunks.
    if D * 4 * 64 <= x_budget:
        tk = D
    else:
        tk = max(_LANE, _round_down(x_budget // (512 * 4), _LANE))
        tk = min(tk, _round_down(D, _LANE))
    nk = pl.cdiv(D, tk)

    # Row (sublane) tile: fill the budget (x row + sublane-padded out row), but
    # keep >= 4 row tiles so both v7x TensorCores get work and the pipeline
    # always has a next block to prefetch.
    per_row_bytes = tk * 4 + _SUBLANE * 4
    tb = max(_SUBLANE, _round_down(x_budget // per_row_bytes, _SUBLANE))
    tb = min(tb, max(_SUBLANE, _round_up(pl.cdiv(B, 4), _SUBLANE)))
    nb = pl.cdiv(B, tb)

    kernel = _make_kernel(D, tk, k_ragged=(D % tk != 0))

    out = pl.pallas_call(
        kernel,
        out_shape=jax.ShapeDtypeStruct((nb, 1, tb), jnp.float32),
        grid_spec=pltpu.PrefetchScalarGridSpec(
            num_scalar_prefetch=0,
            grid=(nb, nk),                                   # reduction axis (k) innermost
            in_specs=[
                pl.BlockSpec((tb, tk), lambda i, k: (i, k)),          # x (pipelined)
                pl.BlockSpec((1, tk), lambda i, k: (0, k)),           # weight
                pl.BlockSpec(memory_space=pltpu.MemorySpace.SMEM),    # bias scalar
            ],
            out_specs=pl.BlockSpec((1, 1, tb), lambda i, k: (i, 0, 0)),
        ),
        compiler_params=pltpu.CompilerParams(
            dimension_semantics=("parallel", "arbitrary"),
            vmem_limit_bytes=int(min(vmem_cap, 48 << 20)),
        ),
    )(x, weight, bias)

    # .flatten() from the torch forward; drop the garbage tail of the last tile.
    return out.reshape(-1)[:B]


if __name__ == "__main__":
    key = jax.random.PRNGKey(0)
    kx, kw, kb = jax.random.split(key, 3)

    batch, in_dim = 20, 32   # batch deliberately NOT a multiple of the row tile

    x = jax.random.normal(kx, (batch, in_dim), dtype=jnp.float32)

    # torch.nn.Linear default init: U(-1/sqrt(in_dim), 1/sqrt(in_dim))
    bound = 1.0 / float(in_dim) ** 0.5
    weight = jax.random.uniform(kw, (1, in_dim), jnp.float32, -bound, bound)
    bias = jax.random.uniform(kb, (1,), jnp.float32, -bound, bound)

    y = linear_regressor(x, weight, bias)
    jax.block_until_ready(y)

    # sanity check against plain-JAX reference
    y_ref = (x @ weight.T + bias).reshape(-1)
    assert y.shape == (batch,)
    assert jnp.allclose(y, y_ref, atol=1e-5, rtol=1e-5)

    print("KERNEL_OK")
</pallas_src>

<mosaic_0001>
module attributes {stable_mosaic.version = 11 : i64} {
  func.func @kernel(%arg0: i32, %arg1: i32, %arg2: memref<8x32xf32, #tpu.memory_space<vmem>>, %arg3: memref<1x32xf32, #tpu.memory_space<vmem>>, %arg4: memref<1xf32, #tpu.memory_space<smem>>, %arg5: memref<1x1x8xf32, #tpu.memory_space<vmem>>) attributes {dimension_semantics = [#tpu.dimension_semantics<parallel>, #tpu.dimension_semantics<arbitrary>], iteration_bounds = array<i64: 3, 1>, scalar_prefetch = 0 : i64, scratch_operands = 0 : i64, tpu.core_type = #tpu.core_type<tc>, window_params = [{transform_indices = @transform_0, window_bounds = array<i64: 8, 32>}, {transform_indices = @transform_1, window_bounds = array<i64: 1, 32>}, {transform_indices = @transform_2, window_bounds = array<i64: 1>}, {transform_indices = @transform_3, window_bounds = array<i64: 1, 1, 8>}]} {
    %c0 = arith.constant 0 : index
    %c0_0 = arith.constant 0 : index
    %0 = vector.load %arg2[%c0, %c0_0] : memref<8x32xf32, #tpu.memory_space<vmem>>, vector<8x32xf32>
    %c0_1 = arith.constant 0 : index
    %c0_2 = arith.constant 0 : index
    %1 = vector.load %arg3[%c0_1, %c0_2] : memref<1x32xf32, #tpu.memory_space<vmem>>, vector<1x32xf32>
    %2 = vector.broadcast %1 : vector<1x32xf32> to vector<8x32xf32>
    %3 = arith.mulf %0, %2 : vector<8x32xf32>
    %cst = arith.constant dense<0.000000e+00> : vector<8xf32>
    %4 = vector.multi_reduction <add>, %3, %cst [1] : vector<8x32xf32> to vector<8xf32>
    %5 = vector.shape_cast %4 : vector<8xf32> to vector<1x1x8xf32>
    %c0_i32 = arith.constant 0 : i32
    %6 = arith.cmpi eq, %arg1, %c0_i32 : i32
    %7 = arith.extui %6 : i1 to i32
    %c0_i32_3 = arith.constant 0 : i32
    %8 = arith.cmpi ne, %7, %c0_i32_3 : i32
    scf.if %8 {
      %c0_10 = arith.constant 0 : index
      %12 = memref.load %arg4[%c0_10] : memref<1xf32, #tpu.memory_space<smem>>
      %13 = vector.broadcast %12 : f32 to vector<1x1x8xf32>
      %c0_11 = arith.constant 0 : index
      %c0_12 = arith.constant 0 : index
      %c0_13 = arith.constant 0 : index
      %14 = vector.load %arg5[%c0_11, %c0_12, %c0_13] : memref<1x1x8xf32, #tpu.memory_space<vmem>>, vector<1x1x8xf32>
      tpu.vector_store %arg5[%c0_11, %c0_12, %c0_13], %13 {strides = array<i32>} : memref<1x1x8xf32, #tpu.memory_space<vmem>>, vector<1x1x8xf32>,
    } else {
    }
    %c0_4 = arith.constant 0 : index
    %c0_5 = arith.constant 0 : index
    %c0_6 = arith.constant 0 : index
    %9 = vector.load %arg5[%c0_4, %c0_5, %c0_6] : memref<1x1x8xf32, #tpu.memory_space<vmem>>, vector<1x1x8xf32>
    %10 = arith.addf %9, %5 : vector<1x1x8xf32>
    %c0_7 = arith.constant 0 : index
    %c0_8 = arith.constant 0 : index
    %c0_9 = arith.constant 0 : index
    %11 = vector.load %arg5[%c0_7, %c0_8, %c0_9] : memref<1x1x8xf32, #tpu.memory_space<vmem>>, vector<1x1x8xf32>
    tpu.vector_store %arg5[%c0_7, %c0_8, %c0_9], %10 {strides = array<i32>} : memref<1x1x8xf32, #tpu.memory_space<vmem>>, vector<1x1x8xf32>,
    return
  }
  func.func @transform_0(%arg0: i32, %arg1: i32) -> (i32, i32) {
    %c0_i32 = arith.constant 0 : i32
    return %arg0, %arg1 : i32, i32
  }
  func.func @transform_1(%arg0: i32, %arg1: i32) -> (i32, i32) {
    %c0_i32 = arith.constant 0 : i32
    %c0_i32_0 = arith.constant 0 : i32
    return %c0_i32, %arg1 : i32, i32
  }
  func.func @transform_2(%arg0: i32, %arg1: i32) -> i32 {
    %c0_i32 = arith.constant 0 : i32
    %c0_i32_0 = arith.constant 0 : i32
    return %c0_i32 : i32
  }
  func.func @transform_3(%arg0: i32, %arg1: i32) -> (i32, i32, i32) {
    %c0_i32 = arith.constant 0 : i32
    %c0_i32_0 = arith.constant 0 : i32
    %c0_i32_1 = arith.constant 0 : i32
    return %arg0, %c0_i32, %c0_i32_0 : i32, i32, i32
  }
}

</mosaic_0001>

<llo_original>
// kernel: tpu_custom_call.1
$region0: #{tpu_custom_call.1}
  #allocation0 [shape = 'u32[]', space=smem, size = 0x4, offset = 0x4, fixed_abs, tag = 'smem constant byte address 0x4 - core index']
  #allocation1 [shape = 'u32[72,128]{1,0:T(1,128)}', space=vmem, size = 0x9000, scoped, tag = 'internal scratch']
  #allocation2 [shape = 'f32[1]{0:T(128)S(6)}', space=smem, size = 0x200, scoped, tag = 'scoped memory for tpu_custom_call.1']
  %s0 = inlined_call_operand.hbm [shape: f32[20,32], index: 0, kind: input, shape index: {}]
  %s1 = inlined_call_operand.vmem [shape: f32[1,32], index: 1, kind: input, shape index: {}]
  %s2 = inlined_call_operand.<no memory space> [shape: f32[1], index: 2, kind: input, shape index: {}]
  %s3 = inlined_call_operand.hbm [shape: f32[3,1,8], index: 3, kind: output, shape index: {}]
  %s4 = sld [smem:[#allocation0]]
  $region53: #{tpu_custom_call.1} parent=0
    _
  %s6 = ssub.s32 1, %s4
  %s7 = scalar_select 0, %s6, %s4
  %8 = sst [smem:[#allocation2]] %s2
  $region1: #{tpu_custom_call.1} parent=0
    #allocation3 [shape = 'u8[8192]{0}', space=vmem, size = 0x2000, scoped, tag = 'input window, operand 0']
    #allocation4 [shape = 's32[2]{0}', space=sflag, size = 0x8, scoped, tag = 'scoped memory for tpu_custom_call.1']
    #allocation5 [shape = 's32[2]{0}', space=sflag, size = 0x8, scoped, tag = 'scoped memory for tpu_custom_call.1']
    #allocation6 [shape = 'u8[1024]{0}', space=vmem, size = 0x400, scoped, tag = 'output window, operand 0']
    %9 = vsyncpa [#allocation4], 0
    %s10 = scalar_lea.sflag [#allocation4], 1
    %11 = vsyncpa %s10, 0
    %12 = vsyncpa [#allocation5], 0
    %s13 = scalar_lea.sflag [#allocation5], 1
    %14 = vsyncpa %s13, 0
    loop: start=0, step=1, limit=5
    $region2: #{tpu_custom_call.1} parent=1 // loop_pre_header
      _
    $region3: #{tpu_custom_call.1} parent=1 // loop_header
      %s16 = sphi 0, %s20
      %p17 = scmp.ge.s32.totalorder %s16, 5
      %s23 = sphi 0, %s35
      %s24 = sphi 0, %s31
      %s25 = sphi 0, %s23
      %s26 = sphi 0, %s24
      %s27 = sphi 0, %s25
      %s28 = sphi 0, %s26
      %s40 = sphi 0, %s42
      %s43 = sphi 0, %s40
      %s44 = sphi 0, %s43
      %s60 = sphi 0, %s44
      %s66 = sphi 0, %s68
      %s69 = sphi 0, %s66
      %s70 = sphi 0, %s69
      %s86 = sphi 0, %s70
      %s90 = sphi 0, %s90
      %s92 = sphi 0, %s90
      %s93 = sphi 0, %s92
      %s107 = sphi 0, %s93
      %s113 = sphi 0, %s115
      %s116 = sphi 0, %s113
      %s117 = sphi 0, %s116
      %s133 = sphi 0, %s117
    $region4: #{tpu_custom_call.1} parent=1 // loop_header_branch
      %19 = sbr.rel (%p17) target = $region8
    $region5: #{tpu_custom_call.1} parent=1 // loop_body
      %s21 = ssub.s32 %s16, 1
      %s22 = ssub.s32 %s16, 2
      %s29 = sadd.s32 1, %s24
      %p30 = scmp.ge.s32.totalorder %s29, 1
      %s31 = scalar_select %p30, 0, %s29
      %s32 = sadd.s32 1, %s23
      %s33 = scalar_select %p30, %s32, %s23
      %p34 = scmp.ge.s32.totalorder %s33, 3
      %s35 = scalar_select %p34, 0, %s33
      %s36 = ssub.s32 %s23, %s35
      %s37 = ssub.s32 %s24, %s31
      %s38 = sor.u32 %s36, %s37
      %p39 = scmp.eq.s32.totalorder %s38, 0
      %s41 = sadd.s32 %s40, 1
      %s42 = scalar_select %p39, %s40, %s41
      %p45 = pneg %p39
      %p46 = scmp.eq.s32.totalorder %s16, 2
      %p47 = por %p45, %p46
      %p48 = scmp.ne.s32.totalorder %s40, %s43
      %p49 = scmp.eq.s32.totalorder %s16, 0
      %p50 = por %p48, %p49
      %p51 = scmp.ne.s32.totalorder %s40, %s43
      %p52 = scmp.eq.s32.totalorder %s21, 2
      %p53 = por %p51, %p52
      %p54 = scmp.ne.s32.totalorder %s43, %s44
      %p55 = scmp.eq.s32.totalorder %s21, 0
      %p56 = por %p54, %p55
      %p57 = scmp.ne.s32.totalorder %s43, %s44
      %p58 = scmp.eq.s32.totalorder %s22, 2
      %p59 = por %p57, %p58
      %p61 = scmp.ne.s32.totalorder %s44, %s60
      %p62 = scmp.eq.s32.totalorder %s22, 0
      %p63 = por %p61, %p62
      %s64 = ssub.s32 %s24, %s31
      %p65 = scmp.eq.s32.totalorder %s64, 0
      %s67 = sadd.s32 %s66, 1
      %s68 = scalar_select %p65, %s66, %s67
      %p71 = pneg %p65
      %p72 = scmp.eq.s32.totalorder %s16, 2
      %p73 = por %p71, %p72
      %p74 = scmp.ne.s32.totalorder %s66, %s69
      %p75 = scmp.eq.s32.totalorder %s16, 0
      %p76 = por %p74, %p75
      %p77 = scmp.ne.s32.totalorder %s66, %s69
      %p78 = scmp.eq.s32.totalorder %s21, 2
      %p79 = por %p77, %p78
      %p80 = scmp.ne.s32.totalorder %s69, %s70
      %p81 = scmp.eq.s32.totalorder %s21, 0
      %p82 = por %p80, %p81
      %p83 = scmp.ne.s32.totalorder %s69, %s70
      %p84 = scmp.eq.s32.totalorder %s22, 2
      %p85 = por %p83, %p84
      %p87 = scmp.ne.s32.totalorder %s70, %s86
      %p88 = scmp.eq.s32.totalorder %s22, 0
      %p89 = por %p87, %p88
      %s91 = sadd.s32 %s90, 1
      %p94 = scmp.eq.s32.totalorder %s16, 2
      %p95 = scmp.ne.s32.totalorder %s90, %s92
      %p96 = scmp.eq.s32.totalorder %s16, 0
      %p97 = por %p95, %p96
      %p98 = scmp.ne.s32.totalorder %s90, %s92
      %p99 = scmp.eq.s32.totalorder %s21, 2
      %p100 = por %p98, %p99
      %p101 = scmp.ne.s32.totalorder %s92, %s93
      %p102 = scmp.eq.s32.totalorder %s21, 0
      %p103 = por %p101, %p102
      %p104 = scmp.ne.s32.totalorder %s92, %s93
      %p105 = scmp.eq.s32.totalorder %s22, 2
      %p106 = por %p104, %p105
      %p108 = scmp.ne.s32.totalorder %s93, %s107
      %p109 = scmp.eq.s32.totalorder %s22, 0
      %p110 = por %p108, %p109
      %s111 = ssub.s32 %s23, %s35
      %p112 = scmp.eq.s32.totalorder %s111, 0
      %s114 = sadd.s32 %s113, 1
      %s115 = scalar_select %p112, %s113, %s114
      %p118 = pneg %p112
      %p119 = scmp.eq.s32.totalorder %s16, 2
      %p120 = por %p118, %p119
      %p121 = scmp.ne.s32.totalorder %s113, %s116
      %p122 = scmp.eq.s32.totalorder %s16, 0
      %p123 = por %p121, %p122
      %p124 = scmp.ne.s32.totalorder %s113, %s116
      %p125 = scmp.eq.s32.totalorder %s21, 2
      %p126 = por %p124, %p125
      %p127 = scmp.ne.s32.totalorder %s116, %s117
      %p128 = scmp.eq.s32.totalorder %s21, 0
      %p129 = por %p127, %p128
      %p130 = scmp.ne.s32.totalorder %s116, %s117
      %p131 = scmp.eq.s32.totalorder %s22, 2
      %p132 = por %p130, %p131
      %p134 = scmp.ne.s32.totalorder %s117, %s133
      %p135 = scmp.eq.s32.totalorder %s22, 0
      %p136 = por %p134, %p135
      %p137 = scmp.le.s32.totalorder 1, %s16
      %p138 = scmp.lt.s32.totalorder %s16, 4
      %p139 = pnand %p137, %p138
      %p140 = pneg %p139
      // Predicated region
      $region9: #{tpu_custom_call.1} parent=5 // pred_check
        _
      $region10: #{tpu_custom_call.1} parent=5 // pred_check_branch
        %142 = sbr.rel (%p139) target = $region12
      $region11: #{tpu_custom_call.1} parent=5 // pred_region
        %s143 = ssub.s32 %s16, 1
        // Predicated region
        $region13: #{tpu_custom_call.1} parent=11 // pred_check
          %p144 = pneg %p82
        $region14: #{tpu_custom_call.1} parent=11 // pred_check_branch
          %146 = sbr.rel (%p144) target = $region16
        $region15: #{tpu_custom_call.1} parent=11 // pred_region
          %p147 = scmp.lt.s32.totalorder %s26, 0
          %s148 = scalar_select %p147, %s26, 0
          %s149 = scalar_lea.vmem %s1, %s148
        $region16: #{tpu_custom_call.1} parent=11 // pred_fallthru
          _
        // Predicated region
        $region17: #{tpu_custom_call.1} parent=11 // pred_check
          %p150 = pneg %p103
        $region18: #{tpu_custom_call.1} parent=11 // pred_check_branch
          %152 = sbr.rel (%p150) target = $region20
        $region19: #{tpu_custom_call.1} parent=11 // pred_region
          _
        $region20: #{tpu_custom_call.1} parent=11 // pred_fallthru
          _
      $region12: #{tpu_custom_call.1} parent=5 // pred_fallthru
        _
      %p153 = scmp.lt.s32.totalorder %s16, 3
      // Predicated region
      $region21: #{tpu_custom_call.1} parent=5 // pred_check
        %p154 = pneg %p153
      $region22: #{tpu_custom_call.1} parent=5 // pred_check_branch
        %156 = sbr.rel (%p154) target = $region24
      $region23: #{tpu_custom_call.1} parent=5 // pred_region
        // Predicated region
        $region25: #{tpu_custom_call.1} parent=23 // pred_check
          %p157 = pneg %p50
        $region26: #{tpu_custom_call.1} parent=23 // pred_check_branch
          %159 = sbr.rel (%p157) target = $region28
        $region27: #{tpu_custom_call.1} parent=23 // pred_region
          %s160 = sand.u32 %s40, 1
          %s161 = scalar_lea.sflag [#allocation4], %s160
          %s162 = sand.u32 %s40, 1
          %s163 = smul.addr %s162, 8
          %s164 = scalar_lea.vmem [#allocation3], %s163
          %166 = vsyncadd %s161, 0
          %s167 = sadd.s32 %s24, %s23
          %s168 = smul.addr %s167, 8
          %s169 = scalar_lea.hbm %s0, %s168
          %s171 = sshll.u32 %s169, 4
          %s172 = int_to_ptr.hbm [resolvable:$true] %s171
          %s173 = sshll.u32 %s164, 4
          %s174 = int_to_ptr.vmem [resolvable:$true] %s173
          %176 = dma.hbm_to_vmem [thread:$0]  %s172, 128, %s174, %s161
        $region28: #{tpu_custom_call.1} parent=23 // pred_fallthru
          _
      $region24: #{tpu_custom_call.1} parent=5 // pred_fallthru
        _
      %p177 = scmp.le.s32.totalorder 1, %s16
      %p178 = scmp.lt.s32.totalorder %s16, 4
      %p179 = pnand %p177, %p178
      %p180 = pneg %p179
      // Predicated region
      $region29: #{tpu_custom_call.1} parent=5 // pred_check
        _
      $region30: #{tpu_custom_call.1} parent=5 // pred_check_branch
        %182 = sbr.rel (%p179) target = $region32
      $region31: #{tpu_custom_call.1} parent=5 // pred_region
        %s183 = ssub.s32 %s16, 1
        %s184 = sand.u32 %s43, 1
        %s185 = scalar_lea.sflag [#allocation4], %s184
        %s186 = sand.u32 %s43, 1
        %s187 = smul.addr %s186, 8
        %s188 = scalar_lea.vmem [#allocation3], %s187
        // Predicated region
        $region33: #{tpu_custom_call.1} parent=31 // pred_check
          %p189 = pneg %p56
        $region34: #{tpu_custom_call.1} parent=31 // pred_check_branch
          %191 = sbr.rel (%p189) target = $region36
        $region35: #{tpu_custom_call.1} parent=31 // pred_region
          %193 = dma.done %s185, 128
        $region36: #{tpu_custom_call.1} parent=31 // pred_fallthru
          _
        %s194 = sand.u32 %s43, 1
        %s195 = scalar_lea.sflag [#allocation4], %s194
        %s196 = sand.u32 %s43, 1
        %s197 = smul.addr %s196, 8
        %s198 = scalar_lea.vmem [#allocation3], %s197
        %p199 = pneg %p56
        %p200 = pneg %p53
        %p201 = scmp.lt.s32.totalorder %s26, 0
        %s202 = scalar_select %p201, %s26, 0
        %s203 = scalar_lea.vmem %s1, %s202
        %p204 = pneg %p82
        %p205 = pneg %p79
        %p206 = pneg %p103
        %p207 = pneg %p100
        %p208 = pneg %p129
        %p209 = pneg %p126
        %s210 = sand.u32 %s116, 1
        %s211 = scalar_lea.sflag [#allocation5], %s210
        %s212 = sand.u32 %s116, 1
        %s213 = scalar_lea.vmem [#allocation6], %s212
        %p214 = scmp.lt.s32.totalorder %s26, 0
        %s215 = scalar_select %p214, %s26, 0
        %s216 = scalar_lea.vmem %s1, %s215
        %v217 = vld [vmem:[%s188] sm:$0xff]
        %v218 = vld [vmem:[%s216] sm:$0x1]
        %v220 = vperm.slane %v218, 0
        %v222 = vmul.f32 %v217, %v220
        %vm223 = vcmask 261120
        %v224 = vsel %vm223, %v222, 0.0
        %225 = vadd.xlane.f32.xlu0 %v224
        %v226 = vpop.xlane.xlu0 %225
        %p227 = scmp.eq.s32.totalorder %s26, 0
        // Predicated region
        $region37: #{tpu_custom_call.1} parent=31 // pred_check
          %p228 = pneg %p227
        $region38: #{tpu_custom_call.1} parent=31 // pred_check_branch
          %230 = sbr.rel (%p228) target = $region40
        $region39: #{tpu_custom_call.1} parent=31 // pred_region
          %s231 = sld [smem:[#allocation2]]
          %v232 = vstv %s231
          %vm233 = vcmask 57344
          %234 = vst.msk [vmem:[%s213] sm:$0x1] %vm233, %v232
        $region40: #{tpu_custom_call.1} parent=31 // pred_fallthru
          _
        %v235 = vld [vmem:[%s213] sm:$0x1]
        %v237 = vperm.slane %v226, 0
        %v238 = vperm.slane %v226, 1
        %v239 = vperm.slane %v226, 2
        %v240 = vperm.slane %v226, 3
        %v241 = vperm.slane %v226, 4
        %v242 = vperm.slane %v226, 5
        %v243 = vperm.slane %v226, 6
        %v244 = vperm.slane %v226, 7
        %245 = vst [vmem:[#allocation1] ss:$9 sm:$0xff] %v237
        %s246 = scalar_lea.vmem [#allocation1], 1
        %247 = vst [vmem:[%s246] ss:$9 sm:$0xff] %v238
        %s248 = scalar_lea.vmem [#allocation1], 2
        %249 = vst [vmem:[%s248] ss:$9 sm:$0xff] %v239
        %s250 = scalar_lea.vmem [#allocation1], 3
        %251 = vst [vmem:[%s250] ss:$9 sm:$0xff] %v240
        %s252 = scalar_lea.vmem [#allocation1], 4
        %253 = vst [vmem:[%s252] ss:$9 sm:$0xff] %v241
        %s254 = scalar_lea.vmem [#allocation1], 5
        %255 = vst [vmem:[%s254] ss:$9 sm:$0xff] %v242
        %s256 = scalar_lea.vmem [#allocation1], 6
        %257 = vst [vmem:[%s256] ss:$9 sm:$0xff] %v243
        %s258 = scalar_lea.vmem [#allocation1], 7
        %259 = vst [vmem:[%s258] ss:$9 sm:$0xff] %v244
        %v260 = vld [vmem:[#allocation1] sm:$0xff]
        %261 = vset.pattern.permute.xlu0 0
        %262 = vperm.xlu0 %261, %v260
        %v263 = vpop.permute.xlu0 %262
        %v264 = vlaneseq
        %v265 = vand.u32 %v264, 127
        %v266 = vperm.slane %v263, %v265
        %v268 = vadd.f32 %v235, %v266
        %vm269 = vcmask 57344
        %270 = vst.msk [vmem:[%s213] sm:$0x1] %vm269, %v268
        %s271 = sand.u32 %s116, 1
        %s272 = scalar_lea.sflag [#allocation5], %s271
        %s273 = sand.u32 %s116, 1
        %s274 = scalar_lea.vmem [#allocation6], %s273
        // Predicated region
        $region41: #{tpu_custom_call.1} parent=31 // pred_check
          %p275 = pneg %p126
        $region42: #{tpu_custom_call.1} parent=31 // pred_check_branch
          %277 = sbr.rel (%p275) target = $region44
        $region43: #{tpu_custom_call.1} parent=31 // pred_region
          %279 = vsyncadd %s272, 0
          %s280 = scalar_lea.hbm %s3, %s25
          %s282 = sshll.u32 %s274, 4
          %s283 = int_to_ptr.vmem [resolvable:$true] %s282
          %s284 = sshll.u32 %s280, 4
          %s285 = int_to_ptr.hbm [resolvable:$true] %s284
          %287 = dma.vmem_to_hbm [thread:$0]  %s283, 16, %s285, %s272
        $region44: #{tpu_custom_call.1} parent=31 // pred_fallthru
          _
      $region32: #{tpu_custom_call.1} parent=5 // pred_fallthru
        _
      %p288 = scmp.le.s32.totalorder 2, %s16
      // Predicated region
      $region45: #{tpu_custom_call.1} parent=5 // pred_check
        %p289 = pneg %p288
      $region46: #{tpu_custom_call.1} parent=5 // pred_check_branch
        %291 = sbr.rel (%p289) target = $region48
      $region47: #{tpu_custom_call.1} parent=5 // pred_region
        %s292 = ssub.s32 %s16, 2
        // Predicated region
        $region49: #{tpu_custom_call.1} parent=47 // pred_check
          %p293 = pneg %p132
        $region50: #{tpu_custom_call.1} parent=47 // pred_check_branch
          %295 = sbr.rel (%p293) target = $region52
        $region51: #{tpu_custom_call.1} parent=47 // pred_region
          %s296 = sand.u32 %s117, 1
          %s297 = scalar_lea.sflag [#allocation5], %s296
          %s298 = sand.u32 %s117, 1
          %s299 = scalar_lea.vmem [#allocation6], %s298
          %301 = dma.done %s297, 16
        $region52: #{tpu_custom_call.1} parent=47 // pred_fallthru
          _
      $region48: #{tpu_custom_call.1} parent=5 // pred_fallthru
        _
    $region6: #{tpu_custom_call.1} parent=1 // loop_footer
      %s20 = sadd.s32 1, %s16
    $region7: #{tpu_custom_call.1} parent=1 // loop_footer_branch
      %15 = sbr.rel target = $region3
    $region8: #{tpu_custom_call.1} parent=1 // loop_exit
      _
    %302 = vsyncpa [#allocation4], 1
    %s303 = scalar_lea.sflag [#allocation4], 1
    %304 = vsyncpa %s303, 1
    %305 = vsyncpa [#allocation5], 1
    %s306 = scalar_lea.sflag [#allocation5], 1
    %307 = vsyncpa %s306, 1

</llo_original>
